<compile_context>
chip_gen: v5e
topology: v5e:2x2
jax: 0.10.0
libtpu: 0.0.40
codegen_flags: <defaults>
</compile_context>

<pallas_src>
import math

import jax
import jax.numpy as jnp
from jax.experimental import pallas as pl
from jax.experimental.pallas import tpu as pltpu

HIDDEN = 128


def _network_kernel(x_ref, w1_ref, b1_ref, w2_ref, b2_ref, w3_ref, b3_ref, g_ref,
                    p_ref, logp_ref):
    # x: (TB, n_inputs) bf16; W*: bf16; b*: (1, out) f32; g: (AS, AS) 0/1 bf16.
    x = x_ref[...]

    # fc1 + ReLU  (MXU, f32 accumulation)
    h1 = jnp.dot(x, w1_ref[...], preferred_element_type=jnp.float32) + b1_ref[...]
    h1 = jnp.maximum(h1, 0.0).astype(w2_ref.dtype)

    # fc2 + ReLU
    h2 = jnp.dot(h1, w2_ref[...], preferred_element_type=jnp.float32) + b2_ref[...]
    h2 = jnp.maximum(h2, 0.0).astype(w3_ref.dtype)

    # fc3 -> logits, kept lane-dense as (TB, A*S); no (B, A, S) relayout in-kernel.
    logits = jnp.dot(h2, w3_ref[...], preferred_element_type=jnp.float32) + b3_ref[...]

    # Segmented softmax over contiguous groups of S lanes, done in the flat layout.
    # Subtracting the row-wide max is algebraically exact.
    m = jnp.max(logits, axis=-1, keepdims=True)
    shifted = logits - m
    e = jnp.exp(shifted)

    # Per-group denominators, broadcast across each group's lanes, via MXU matmuls
    # against the 0/1 block-diagonal group matrix.  Split e into an exact bf16 "hi"
    # part plus a bf16 residual so both passes are exact bf16 x {0,1} products with
    # f32 accumulation -> denom accurate to ~1e-5 relative on every TPU generation.
    g = g_ref[...]
    e_hi = e.astype(jnp.bfloat16)
    e_lo = (e - e_hi.astype(jnp.float32)).astype(jnp.bfloat16)
    denom = (jnp.dot(e_hi, g, preferred_element_type=jnp.float32)
             + jnp.dot(e_lo, g, preferred_element_type=jnp.float32))
    # Guard against a fully-underflowed group (keeps results finite; never hit for
    # this small head).
    denom = jnp.maximum(denom, 1e-30)

    p_ref[...] = (e / denom).astype(p_ref.dtype)
    logp_ref[...] = (shifted - jnp.log(denom)).astype(logp_ref.dtype)


def _choose_tile(batch, block_b):
    """Batch-tile size: multiple of 8 (or the full batch), >= 2 grid blocks whenever
    batch >= 16 so v7x's two TensorCores both get work; no padding needed (Pallas
    clips the boundary block)."""
    block_b = max(8, (block_b // 8) * 8)
    if batch < 16:
        return batch                       # block_shape == array dim is always legal
    half = (batch + 1) // 2
    tb = ((half + 7) // 8) * 8             # multiple of 8 keeps boundary blocks legal
    return min(tb, block_b)


def network_forward(state, params, n_actions, n_supports, *, block_b=2048,
                    out_dtype=jnp.float32):
    """state: (B, n_inputs) float32. Returns (softmax, log_softmax), each (B, A, S)."""
    w1, b1, w2, b2, w3, b3 = params
    B, n_inputs = state.shape
    H = w1.shape[1]
    AS = n_actions * n_supports

    # bf16 MXU operands on every generation; biases / accumulation / softmax stay f32.
    cdt = jnp.bfloat16
    x = state.astype(cdt)
    w1c, w2c, w3c = (w.astype(cdt) for w in (w1, w2, w3))
    b1f, b2f, b3f = (b.astype(jnp.float32).reshape(1, -1) for b in (b1, b2, b3))

    # Block-diagonal 0/1 group matrix (exact in bf16); constant index map -> fetched
    # once and kept VMEM-resident.
    grp = jnp.arange(AS, dtype=jnp.int32) // n_supports
    G = (grp[:, None] == grp[None, :]).astype(jnp.bfloat16)

    tb = _choose_tile(B, block_b)
    grid = (pl.cdiv(B, tb),)

    const = lambda i: (0, 0)
    batched = lambda i: (i, 0)

    p_flat, logp_flat = pl.pallas_call(
        _network_kernel,
        out_shape=(jax.ShapeDtypeStruct((B, AS), out_dtype),
                   jax.ShapeDtypeStruct((B, AS), out_dtype)),
        grid=grid,
        in_specs=[
            pl.BlockSpec((tb, n_inputs), batched),   # x: tiled on batch
            pl.BlockSpec((n_inputs, H), const),      # w1 (VMEM-resident)
            pl.BlockSpec((1, H), const),             # b1
            pl.BlockSpec((H, H), const),             # w2
            pl.BlockSpec((1, H), const),             # b2
            pl.BlockSpec((H, AS), const),            # w3
            pl.BlockSpec((1, AS), const),            # b3
            pl.BlockSpec((AS, AS), const),           # block-diagonal group matrix
        ],
        out_specs=(
            pl.BlockSpec((tb, AS), batched),
            pl.BlockSpec((tb, AS), batched),
        ),
        compiler_params=pltpu.CompilerParams(
            dimension_semantics=("parallel",),
            vmem_limit_bytes=64 * 1024 * 1024,
        ),
    )(x, w1c, b1f, w2c, b2f, w3c, b3f, G)

    # Free metadata split of the lane-dense last dim into (A, S).
    return (p_flat.reshape(B, n_actions, n_supports),
            logp_flat.reshape(B, n_actions, n_supports))


def init_params(key, n_inputs, n_actions, n_supports, hidden=HIDDEN):
    """Deterministic init mirroring torch.nn.Linear default (uniform +-1/sqrt(fan_in)).
    Weights stored as (in, out); biases as (1, out) for a lane-major layout."""
    dims = [(n_inputs, hidden), (hidden, hidden), (hidden, n_actions * n_supports)]
    params = []
    for (fan_in, fan_out) in dims:
        key, kw, kb = jax.random.split(key, 3)
        bound = 1.0 / math.sqrt(fan_in)
        w = jax.random.uniform(kw, (fan_in, fan_out), jnp.float32, -bound, bound)
        b = jax.random.uniform(kb, (1, fan_out), jnp.float32, -bound, bound)
        params.extend([w, b])
    return tuple(params)


def _reference(state, params, n_actions, n_supports):
    """Pure-JAX reference with the same dtype policy as the kernel."""
    w1, b1, w2, b2, w3, b3 = params
    cdt = jnp.bfloat16
    x = state.astype(cdt)
    h1 = jnp.maximum(
        jnp.dot(x, w1.astype(cdt), preferred_element_type=jnp.float32)
        + b1.astype(jnp.float32).reshape(1, -1), 0.0)
    h2 = jnp.maximum(
        jnp.dot(h1.astype(cdt), w2.astype(cdt), preferred_element_type=jnp.float32)
        + b2.astype(jnp.float32).reshape(1, -1), 0.0)
    logits = (jnp.dot(h2.astype(cdt), w3.astype(cdt), preferred_element_type=jnp.float32)
              + b3.astype(jnp.float32).reshape(1, -1))
    z = logits.reshape(-1, n_actions, n_supports)
    return jax.nn.softmax(z, axis=-1), jax.nn.log_softmax(z, axis=-1)


if __name__ == "__main__":
    n_inputs, n_actions, n_supports = 16, 4, 32
    batch = 2

    key = jax.random.PRNGKey(0)
    key, kx = jax.random.split(key)
    state = jax.random.normal(kx, (batch, n_inputs), jnp.float32)
    params = init_params(key, n_inputs, n_actions, n_supports)

    probs, log_probs = network_forward(state, params, n_actions, n_supports)
    jax.block_until_ready((probs, log_probs))

    # sanity: shapes, softmax rows sum to 1, log_softmax consistent with softmax
    assert probs.shape == (batch, n_actions, n_supports)
    assert log_probs.shape == (batch, n_actions, n_supports)
    assert jnp.allclose(jnp.sum(probs, axis=-1), 1.0, atol=1e-3)
    assert jnp.allclose(jnp.exp(log_probs), probs, atol=2e-3)

    # compare against a pure-JAX reference using the same dtype policy
    ref_p, ref_lp = _reference(state, params, n_actions, n_supports)
    assert jnp.allclose(probs, ref_p, atol=2e-3, rtol=2e-3)
    assert jnp.allclose(log_probs, ref_lp, atol=2e-3, rtol=2e-3)

    print("KERNEL_OK")
</pallas_src>

<mosaic_0001>
module attributes {stable_mosaic.version = 11 : i64} {
  func.func @_network_kernel(%arg0: i32, %arg1: memref<2x16xbf16, #tpu.memory_space<vmem>>, %arg2: memref<16x128xbf16, #tpu.memory_space<vmem>>, %arg3: memref<1x128xf32, #tpu.memory_space<vmem>>, %arg4: memref<128x128xbf16, #tpu.memory_space<vmem>>, %arg5: memref<1x128xf32, #tpu.memory_space<vmem>>, %arg6: memref<128x128xbf16, #tpu.memory_space<vmem>>, %arg7: memref<1x128xf32, #tpu.memory_space<vmem>>, %arg8: memref<128x128xbf16, #tpu.memory_space<vmem>>, %arg9: memref<2x128xf32, #tpu.memory_space<vmem>>, %arg10: memref<2x128xf32, #tpu.memory_space<vmem>>) attributes {dimension_semantics = [#tpu.dimension_semantics<parallel>], iteration_bounds = array<i64: 1>, scalar_prefetch = 0 : i64, scratch_operands = 0 : i64, tpu.core_type = #tpu.core_type<tc>, window_params = [{transform_indices = @transform_0, window_bounds = array<i64: 2, 16>}, {pipeline_mode = #tpu.pipeline_mode<synchronous>, transform_indices = @transform_1, window_bounds = array<i64: 16, 128>}, {pipeline_mode = #tpu.pipeline_mode<synchronous>, transform_indices = @transform_2, window_bounds = array<i64: 1, 128>}, {pipeline_mode = #tpu.pipeline_mode<synchronous>, transform_indices = @transform_3, window_bounds = array<i64: 128, 128>}, {pipeline_mode = #tpu.pipeline_mode<synchronous>, transform_indices = @transform_4, window_bounds = array<i64: 1, 128>}, {pipeline_mode = #tpu.pipeline_mode<synchronous>, transform_indices = @transform_5, window_bounds = array<i64: 128, 128>}, {pipeline_mode = #tpu.pipeline_mode<synchronous>, transform_indices = @transform_6, window_bounds = array<i64: 1, 128>}, {pipeline_mode = #tpu.pipeline_mode<synchronous>, transform_indices = @transform_7, window_bounds = array<i64: 128, 128>}, {transform_indices = @transform_8, window_bounds = array<i64: 2, 128>}, {transform_indices = @transform_9, window_bounds = array<i64: 2, 128>}]} {
    %c0 = arith.constant 0 : index
    %c0_0 = arith.constant 0 : index
    %0 = vector.load %arg1[%c0, %c0_0] : memref<2x16xbf16, #tpu.memory_space<vmem>>, vector<2x16xbf16>
    %c0_1 = arith.constant 0 : index
    %c0_2 = arith.constant 0 : index
    %1 = vector.load %arg2[%c0_1, %c0_2] : memref<16x128xbf16, #tpu.memory_space<vmem>>, vector<16x128xbf16>
    %cst = arith.constant dense<0.000000e+00> : vector<2x128xf32>
    %2 = tpu.matmul %0, %1, %cst {dimension_numbers = #tpu.dot_dimension_numbers<[1], [0], [0], [1], [0, 0, 1, 1], [], []>} : vector<2x16xbf16>, vector<16x128xbf16>, vector<2x128xf32> -> vector<2x128xf32>
    %c0_3 = arith.constant 0 : index
    %c0_4 = arith.constant 0 : index
    %3 = vector.load %arg3[%c0_3, %c0_4] : memref<1x128xf32, #tpu.memory_space<vmem>>, vector<1x128xf32>
    %4 = vector.broadcast %3 : vector<1x128xf32> to vector<2x128xf32>
    %5 = arith.addf %2, %4 : vector<2x128xf32>
    %cst_5 = arith.constant 0.000000e+00 : f32
    %6 = vector.broadcast %cst_5 : f32 to vector<2x128xf32>
    %7 = arith.maximumf %5, %6 : vector<2x128xf32>
    %8 = arith.truncf %7 : vector<2x128xf32> to vector<2x128xbf16>
    %c0_6 = arith.constant 0 : index
    %c0_7 = arith.constant 0 : index
    %9 = vector.load %arg4[%c0_6, %c0_7] : memref<128x128xbf16, #tpu.memory_space<vmem>>, vector<128x128xbf16>
    %cst_8 = arith.constant dense<0.000000e+00> : vector<2x128xf32>
    %10 = tpu.matmul %8, %9, %cst_8 {dimension_numbers = #tpu.dot_dimension_numbers<[1], [0], [0], [1], [0, 0, 1, 1], [], []>} : vector<2x128xbf16>, vector<128x128xbf16>, vector<2x128xf32> -> vector<2x128xf32>
    %c0_9 = arith.constant 0 : index
    %c0_10 = arith.constant 0 : index
    %11 = vector.load %arg5[%c0_9, %c0_10] : memref<1x128xf32, #tpu.memory_space<vmem>>, vector<1x128xf32>
    %12 = vector.broadcast %11 : vector<1x128xf32> to vector<2x128xf32>
    %13 = arith.addf %10, %12 : vector<2x128xf32>
    %cst_11 = arith.constant 0.000000e+00 : f32
    %14 = vector.broadcast %cst_11 : f32 to vector<2x128xf32>
    %15 = arith.maximumf %13, %14 : vector<2x128xf32>
    %16 = arith.truncf %15 : vector<2x128xf32> to vector<2x128xbf16>
    %c0_12 = arith.constant 0 : index
    %c0_13 = arith.constant 0 : index
    %17 = vector.load %arg6[%c0_12, %c0_13] : memref<128x128xbf16, #tpu.memory_space<vmem>>, vector<128x128xbf16>
    %cst_14 = arith.constant dense<0.000000e+00> : vector<2x128xf32>
    %18 = tpu.matmul %16, %17, %cst_14 {dimension_numbers = #tpu.dot_dimension_numbers<[1], [0], [0], [1], [0, 0, 1, 1], [], []>} : vector<2x128xbf16>, vector<128x128xbf16>, vector<2x128xf32> -> vector<2x128xf32>
    %c0_15 = arith.constant 0 : index
    %c0_16 = arith.constant 0 : index
    %19 = vector.load %arg7[%c0_15, %c0_16] : memref<1x128xf32, #tpu.memory_space<vmem>>, vector<1x128xf32>
    %20 = vector.broadcast %19 : vector<1x128xf32> to vector<2x128xf32>
    %21 = arith.addf %18, %20 : vector<2x128xf32>
    %cst_17 = arith.constant dense<0xFF800000> : vector<2xf32>
    %22 = vector.multi_reduction <maximumf>, %21, %cst_17 [1] : vector<2x128xf32> to vector<2xf32>
    %23 = vector.shape_cast %22 : vector<2xf32> to vector<2x1xf32>
    %24 = vector.broadcast %23 : vector<2x1xf32> to vector<2x128xf32>
    %25 = arith.subf %21, %24 : vector<2x128xf32>
    %26 = math.exp %25 : vector<2x128xf32>
    %c0_18 = arith.constant 0 : index
    %c0_19 = arith.constant 0 : index
    %27 = vector.load %arg8[%c0_18, %c0_19] : memref<128x128xbf16, #tpu.memory_space<vmem>>, vector<128x128xbf16>
    %28 = arith.truncf %26 : vector<2x128xf32> to vector<2x128xbf16>
    %29 = arith.extf %28 : vector<2x128xbf16> to vector<2x128xf32>
    %30 = arith.subf %26, %29 : vector<2x128xf32>
    %31 = arith.truncf %30 : vector<2x128xf32> to vector<2x128xbf16>
    %cst_20 = arith.constant dense<0.000000e+00> : vector<2x128xf32>
    %32 = tpu.matmul %28, %27, %cst_20 {dimension_numbers = #tpu.dot_dimension_numbers<[1], [0], [0], [1], [0, 0, 1, 1], [], []>} : vector<2x128xbf16>, vector<128x128xbf16>, vector<2x128xf32> -> vector<2x128xf32>
    %cst_21 = arith.constant dense<0.000000e+00> : vector<2x128xf32>
    %33 = tpu.matmul %31, %27, %cst_21 {dimension_numbers = #tpu.dot_dimension_numbers<[1], [0], [0], [1], [0, 0, 1, 1], [], []>} : vector<2x128xbf16>, vector<128x128xbf16>, vector<2x128xf32> -> vector<2x128xf32>
    %34 = arith.addf %32, %33 : vector<2x128xf32>
    %cst_22 = arith.constant 1.000000e-30 : f32
    %35 = vector.broadcast %cst_22 : f32 to vector<2x128xf32>
    %36 = arith.maximumf %34, %35 : vector<2x128xf32>
    %37 = arith.divf %26, %36 : vector<2x128xf32>
    %c0_23 = arith.constant 0 : index
    %c0_24 = arith.constant 0 : index
    %38 = vector.load %arg9[%c0_23, %c0_24] : memref<2x128xf32, #tpu.memory_space<vmem>>, vector<2x128xf32>
    tpu.vector_store %arg9[%c0_23, %c0_24], %37 {strides = array<i32>} : memref<2x128xf32, #tpu.memory_space<vmem>>, vector<2x128xf32>,
    %39 = math.log %36 : vector<2x128xf32>
    %40 = arith.subf %25, %39 : vector<2x128xf32>
    %c0_25 = arith.constant 0 : index
    %c0_26 = arith.constant 0 : index
    %41 = vector.load %arg10[%c0_25, %c0_26] : memref<2x128xf32, #tpu.memory_space<vmem>>, vector<2x128xf32>
    tpu.vector_store %arg10[%c0_25, %c0_26], %40 {strides = array<i32>} : memref<2x128xf32, #tpu.memory_space<vmem>>, vector<2x128xf32>,
    return
  }
  func.func @transform_0(%arg0: i32) -> (i32, i32) {
    %c0_i32 = arith.constant 0 : i32
    %c0_i32_0 = arith.constant 0 : i32
    return %arg0, %c0_i32 : i32, i32
  }
  func.func @transform_1(%arg0: i32) -> (i32, i32) {
    %c0_i32 = arith.constant 0 : i32
    %c0_i32_0 = arith.constant 0 : i32
    %c0_i32_1 = arith.constant 0 : i32
    return %c0_i32, %c0_i32_0 : i32, i32
  }
  func.func @transform_2(%arg0: i32) -> (i32, i32) {
    %c0_i32 = arith.constant 0 : i32
    %c0_i32_0 = arith.constant 0 : i32
    %c0_i32_1 = arith.constant 0 : i32
    return %c0_i32, %c0_i32_0 : i32, i32
  }
  func.func @transform_3(%arg0: i32) -> (i32, i32) {
    %c0_i32 = arith.constant 0 : i32
    %c0_i32_0 = arith.constant 0 : i32
    %c0_i32_1 = arith.constant 0 : i32
    return %c0_i32, %c0_i32_0 : i32, i32
  }
  func.func @transform_4(%arg0: i32) -> (i32, i32) {
    %c0_i32 = arith.constant 0 : i32
    %c0_i32_0 = arith.constant 0 : i32
    %c0_i32_1 = arith.constant 0 : i32
    return %c0_i32, %c0_i32_0 : i32, i32
  }
  func.func @transform_5(%arg0: i32) -> (i32, i32) {
    %c0_i32 = arith.constant 0 : i32
    %c0_i32_0 = arith.constant 0 : i32
    %c0_i32_1 = arith.constant 0 : i32
    return %c0_i32, %c0_i32_0 : i32, i32
  }
  func.func @transform_6(%arg0: i32) -> (i32, i32) {
    %c0_i32 = arith.constant 0 : i32
    %c0_i32_0 = arith.constant 0 : i32
    %c0_i32_1 = arith.constant 0 : i32
    return %c0_i32, %c0_i32_0 : i32, i32
  }
  func.func @transform_7(%arg0: i32) -> (i32, i32) {
    %c0_i32 = arith.constant 0 : i32
    %c0_i32_0 = arith.constant 0 : i32
    %c0_i32_1 = arith.constant 0 : i32
    return %c0_i32, %c0_i32_0 : i32, i32
  }
  func.func @transform_8(%arg0: i32) -> (i32, i32) {
    %c0_i32 = arith.constant 0 : i32
    %c0_i32_0 = arith.constant 0 : i32
    return %arg0, %c0_i32 : i32, i32
  }
  func.func @transform_9(%arg0: i32) -> (i32, i32) {
    %c0_i32 = arith.constant 0 : i32
    %c0_i32_0 = arith.constant 0 : i32
    return %arg0, %c0_i32 : i32, i32
  }
}

</mosaic_0001>

<llo_original>
// kernel: tpu_custom_call.1
$region0: #{tpu_custom_call.1}
  #allocation0 [shape = 'u32[]', space=smem, size = 0x4, offset = 0x4, fixed_abs, tag = 'smem constant byte address 0x4 - core index']
  #allocation1 [shape = 'u32[72,128]{1,0:T(1,128)}', space=vmem, size = 0x9000, scoped, tag = 'internal scratch']
  %s0 = inlined_call_operand.hbm [shape: bf16[2,16], index: 0, kind: input, shape index: {}]
  %s1 = inlined_call_operand.hbm [shape: bf16[16,128], index: 1, kind: input, shape index: {}]
  %s2 = inlined_call_operand.vmem [shape: f32[1,128], index: 2, kind: input, shape index: {}]
  %s3 = inlined_call_operand.hbm [shape: bf16[128,128], index: 3, kind: input, shape index: {}]
  %s4 = inlined_call_operand.vmem [shape: f32[1,128], index: 4, kind: input, shape index: {}]
  %s5 = inlined_call_operand.hbm [shape: bf16[128,128], index: 5, kind: input, shape index: {}]
  %s6 = inlined_call_operand.vmem [shape: f32[1,128], index: 6, kind: input, shape index: {}]
  %s7 = inlined_call_operand.hbm [shape: bf16[128,128], index: 7, kind: input, shape index: {}]
  %s8 = inlined_call_operand.hbm [shape: f32[2,128], index: 8, kind: output, shape index: {0}]
  %s9 = inlined_call_operand.hbm [shape: f32[2,128], index: 9, kind: output, shape index: {1}]
  %10 = xla_tuple %s8, %s9
  %s11 = sld [smem:[#allocation0]]
  $region70: #{tpu_custom_call.1} parent=0
    _
  %s13 = ssub.s32 1, %s11
  %s14 = scalar_select 0, %s13, %s11
  $region1: #{tpu_custom_call.1} parent=0
    #allocation2 [shape = 'u8[512]{0}', space=vmem, size = 0x400, scoped, tag = 'input window, operand 0, single buffered']
    #allocation3 [shape = 's32[1]{0}', space=sflag, size = 0x4, scoped, tag = 'scoped memory for tpu_custom_call.1']
    #allocation4 [shape = 's32[1]{0}', space=sflag, size = 0x4, scoped, tag = 'scoped memory for tpu_custom_call.1']
    #allocation5 [shape = 'u8[4096]{0}', space=vmem, size = 0x1000, scoped, tag = 'input window, operand 1, single buffered']
    #allocation6 [shape = 's32[1]{0}', space=sflag, size = 0x4, scoped, tag = 'scoped memory for tpu_custom_call.1']
    #allocation7 [shape = 'u8[32768]{0}', space=vmem, size = 0x8000, scoped, tag = 'input window, operand 3, single buffered']
    #allocation8 [shape = 'u8[32768]{0}', space=vmem, size = 0x8000, scoped, tag = 'input window, operand 5, single buffered']
    #allocation9 [shape = 's32[1]{0}', space=sflag, size = 0x4, scoped, tag = 'scoped memory for tpu_custom_call.1']
    #allocation10 [shape = 'u8[32768]{0}', space=vmem, size = 0x8000, scoped, tag = 'input window, operand 7, single buffered']
    #allocation11 [shape = 'u8[1024]{0}', space=vmem, size = 0x400, scoped, tag = 'output window, operand 0, single buffered']
    #allocation12 [shape = 'u8[1024]{0}', space=vmem, size = 0x400, scoped, tag = 'output window, operand 1, single buffered']
    #allocation13 [shape = 's32[1]{0}', space=sflag, size = 0x4, scoped, tag = 'scoped memory for tpu_custom_call.1']
    %15 = vsyncpa [#allocation3], 0
    %16 = vsyncpa [#allocation6], 0
    %17 = vsyncpa [#allocation9], 0
    %18 = vsyncpa [#allocation4], 0
    %19 = vsyncpa [#allocation13], 0
    // Predicated region
    $region2: #{tpu_custom_call.1} parent=1 // pred_check
      _
    $region3: #{tpu_custom_call.1} parent=1 // pred_check_branch
      %21 = sbr.rel (0) target = $region5
    $region4: #{tpu_custom_call.1} parent=1 // pred_region
      %23 = vsyncadd [#allocation3], 0
      %s25 = sshll.u32 %s0, 4
      %s26 = int_to_ptr.hbm [resolvable:$true] %s25
      %s27 = sshll.u32 [#allocation2], 4
      %s28 = int_to_ptr.vmem [resolvable:$true] %s27
      %30 = dma.hbm_to_vmem [thread:$0]  %s26, 16, %s28, [#allocation3]
    $region5: #{tpu_custom_call.1} parent=1 // pred_fallthru
      _
    // Predicated region
    $region6: #{tpu_custom_call.1} parent=1 // pred_check
      _
    $region7: #{tpu_custom_call.1} parent=1 // pred_check_branch
      %32 = sbr.rel (0) target = $region9
    $region8: #{tpu_custom_call.1} parent=1 // pred_region
      %34 = vsyncadd [#allocation6], 0
      %s35 = sshll.u32 %s1, 4
      %s36 = int_to_ptr.hbm [resolvable:$true] %s35
      %s37 = sshll.u32 [#allocation5], 4
      %s38 = int_to_ptr.vmem [resolvable:$true] %s37
      %43 = dma.hbm_to_vmem [thread:$0]  %s36, 128, %s38, [#allocation6], 64, 64, 4
    $region9: #{tpu_custom_call.1} parent=1 // pred_fallthru
      _
    // Predicated region
    $region10: #{tpu_custom_call.1} parent=1 // pred_check
      _
    $region11: #{tpu_custom_call.1} parent=1 // pred_check_branch
      %45 = sbr.rel (0) target = $region13
    $region12: #{tpu_custom_call.1} parent=1 // pred_region
      _
    $region13: #{tpu_custom_call.1} parent=1 // pred_fallthru
      _
    // Predicated region
    $region14: #{tpu_custom_call.1} parent=1 // pred_check
      _
    $region15: #{tpu_custom_call.1} parent=1 // pred_check_branch
      %47 = sbr.rel (0) target = $region17
    $region16: #{tpu_custom_call.1} parent=1 // pred_region
      %49 = vsyncadd [#allocation6], 0
      %s50 = sshll.u32 %s3, 4
      %s51 = int_to_ptr.hbm [resolvable:$true] %s50
      %s52 = sshll.u32 [#allocation7], 4
      %s53 = int_to_ptr.vmem [resolvable:$true] %s52
      %58 = dma.hbm_to_vmem [thread:$0]  %s51, 1024, %s53, [#allocation6], 64, 64, 4
    $region17: #{tpu_custom_call.1} parent=1 // pred_fallthru
      _
    // Predicated region
    $region18: #{tpu_custom_call.1} parent=1 // pred_check
      _
    $region19: #{tpu_custom_call.1} parent=1 // pred_check_branch
      %60 = sbr.rel (0) target = $region21
    $region20: #{tpu_custom_call.1} parent=1 // pred_region
      _
    $region21: #{tpu_custom_call.1} parent=1 // pred_fallthru
      _
    // Predicated region
    $region22: #{tpu_custom_call.1} parent=1 // pred_check
      _
    $region23: #{tpu_custom_call.1} parent=1 // pred_check_branch
      %62 = sbr.rel (0) target = $region25
    $region24: #{tpu_custom_call.1} parent=1 // pred_region
      %64 = vsyncadd [#allocation9], 0
      %s65 = sshll.u32 %s5, 4
      %s66 = int_to_ptr.hbm [resolvable:$true] %s65
      %s67 = sshll.u32 [#allocation8], 4
      %s68 = int_to_ptr.vmem [resolvable:$true] %s67
      %73 = dma.hbm_to_vmem [thread:$0]  %s66, 1024, %s68, [#allocation9], 64, 64, 4
    $region25: #{tpu_custom_call.1} parent=1 // pred_fallthru
      _
    // Predicated region
    $region26: #{tpu_custom_call.1} parent=1 // pred_check
      _
    $region27: #{tpu_custom_call.1} parent=1 // pred_check_branch
      %75 = sbr.rel (0) target = $region29
    $region28: #{tpu_custom_call.1} parent=1 // pred_region
      _
    $region29: #{tpu_custom_call.1} parent=1 // pred_fallthru
      _
    // Predicated region
    $region30: #{tpu_custom_call.1} parent=1 // pred_check
      _
    $region31: #{tpu_custom_call.1} parent=1 // pred_check_branch
      %77 = sbr.rel (0) target = $region33
    $region32: #{tpu_custom_call.1} parent=1 // pred_region
      %79 = vsyncadd [#allocation9], 0
      %s80 = sshll.u32 %s7, 4
      %s81 = int_to_ptr.hbm [resolvable:$true] %s80
      %s82 = sshll.u32 [#allocation10], 4
      %s83 = int_to_ptr.vmem [resolvable:$true] %s82
      %88 = dma.hbm_to_vmem [thread:$0]  %s81, 1024, %s83, [#allocation9], 64, 64, 4
    $region33: #{tpu_custom_call.1} parent=1 // pred_fallthru
      _
    // Predicated region
    $region34: #{tpu_custom_call.1} parent=1 // pred_check
      _
    $region35: #{tpu_custom_call.1} parent=1 // pred_check_branch
      %90 = sbr.rel (0) target = $region37
    $region36: #{tpu_custom_call.1} parent=1 // pred_region
      %92 = dma.done [#allocation3], 16
    $region37: #{tpu_custom_call.1} parent=1 // pred_fallthru
      _
    // Predicated region
    $region38: #{tpu_custom_call.1} parent=1 // pred_check
      _
    $region39: #{tpu_custom_call.1} parent=1 // pred_check_branch
      %94 = sbr.rel (0) target = $region41
    $region40: #{tpu_custom_call.1} parent=1 // pred_region
      %96 = dma.done [#allocation6], 128
    $region41: #{tpu_custom_call.1} parent=1 // pred_fallthru
      _
    // Predicated region
    $region42: #{tpu_custom_call.1} parent=1 // pred_check
      _
    $region43: #{tpu_custom_call.1} parent=1 // pred_check_branch
      %98 = sbr.rel (0) target = $region45
    $region44: #{tpu_custom_call.1} parent=1 // pred_region
      %100 = dma.done [#allocation6], 1024
    $region45: #{tpu_custom_call.1} parent=1 // pred_fallthru
      _
    // Predicated region
    $region46: #{tpu_custom_call.1} parent=1 // pred_check
      _
    $region47: #{tpu_custom_call.1} parent=1 // pred_check_branch
      %102 = sbr.rel (0) target = $region49
    $region48: #{tpu_custom_call.1} parent=1 // pred_region
      %104 = dma.done [#allocation9], 1024
    $region49: #{tpu_custom_call.1} parent=1 // pred_fallthru
      _
    // Predicated region
    $region50: #{tpu_custom_call.1} parent=1 // pred_check
      _
    $region51: #{tpu_custom_call.1} parent=1 // pred_check_branch
      %106 = sbr.rel (0) target = $region53
    $region52: #{tpu_custom_call.1} parent=1 // pred_region
      %108 = dma.done [#allocation9], 1024
    $region53: #{tpu_custom_call.1} parent=1 // pred_fallthru
      _
    %v110 = vld [vmem:[#allocation2] sm:$0x1]
    %v111 = vld [vmem:[#allocation5] sm:$0xf]
    %v112 = vld [vmem:[#allocation5 + $0x4] sm:$0xf]
    %v113 = vld [vmem:[%s2] sm:$0x1]
    %v115 = vperm.slane %v113, 0
    %v119 = vunpack.c.l.b16 %v111
    %v120 = vunpack.c.l.b16 %v112
    %v121 = vpack.c.b16 %v120, %v119
    %vm123 = vcmask 130048
    %v125 = vsel %vm123, %v110, 0
    %127 = vmatpush.bf16.msra.mxu0 0
    %128 = vmatpush.bf16.msra.mxu0 0
    %129 = vmatpush.bf16.msra.mxu0 0
    %130 = vmatpush.bf16.msra.mxu0 0
    %131 = vmatpush.bf16.msra.mxu0 0
    %132 = vmatpush.bf16.msra.mxu0 0
    %133 = vmatpush.bf16.msra.mxu0 0
    %134 = vmatpush.bf16.msra.mxu0 %v121
    %135 = vmatmul.bf16.gmra.mxu0 %v125
    %v136 = vpop.f32.mrf.mxu0
    %v137 = vadd.f32 %v115, %v136
    %v138 = vpop.f32.mrf.mxu0
    %139 = vdwg.mxu0
    %v140 = vmax.f32 %v137, 0.0
    %v141 = vpack.c.bf16 %v140, %v140
    %v142 = vld [vmem:[#allocation7] sm:$0xf]
    %v143 = vld [vmem:[#allocation7 + $0x4] sm:$0xf]
    %v144 = vld [vmem:[#allocation7 + $0x8] sm:$0xf]
    %v145 = vld [vmem:[#allocation7 + $0xc] sm:$0xf]
    %v146 = vld [vmem:[#allocation7 + $0x10] sm:$0xf]
    %v147 = vld [vmem:[#allocation7 + $0x14] sm:$0xf]
    %v148 = vld [vmem:[#allocation7 + $0x18] sm:$0xf]
    %v149 = vld [vmem:[#allocation7 + $0x1c] sm:$0xf]
    %v150 = vld [vmem:[#allocation7 + $0x20] sm:$0xf]
    %v151 = vld [vmem:[#allocation7 + $0x24] sm:$0xf]
    %v152 = vld [vmem:[#allocation7 + $0x28] sm:$0xf]
    %v153 = vld [vmem:[#allocation7 + $0x2c] sm:$0xf]
    %v154 = vld [vmem:[#allocation7 + $0x30] sm:$0xf]
    %v155 = vld [vmem:[#allocation7 + $0x34] sm:$0xf]
    %v156 = vld [vmem:[#allocation7 + $0x38] sm:$0xf]
    %v157 = vld [vmem:[#allocation7 + $0x3c] sm:$0xf]
    %v158 = vld [vmem:[%s4] sm:$0x1]
    %v160 = vperm.slane %v158, 0
    %v178 = vunpack.c.l.b16 %v142
    %v179 = vunpack.c.l.b16 %v143
    %v180 = vunpack.c.l.b16 %v144
    %v181 = vunpack.c.l.b16 %v145
    %v182 = vunpack.c.l.b16 %v146
    %v183 = vunpack.c.l.b16 %v147
    %v184 = vunpack.c.l.b16 %v148
    %v185 = vunpack.c.l.b16 %v149
    %v186 = vunpack.c.l.b16 %v150
    %v187 = vunpack.c.l.b16 %v151
    %v188 = vunpack.c.l.b16 %v152
    %v189 = vunpack.c.l.b16 %v153
    %v190 = vunpack.c.l.b16 %v154
    %v191 = vunpack.c.l.b16 %v155
    %v192 = vunpack.c.l.b16 %v156
    %v193 = vunpack.c.l.b16 %v157
    %v194 = vpack.c.b16 %v179, %v178
    %v195 = vpack.c.b16 %v181, %v180
    %v196 = vpack.c.b16 %v183, %v182
    %v197 = vpack.c.b16 %v185, %v184
    %v198 = vpack.c.b16 %v187, %v186
    %v199 = vpack.c.b16 %v189, %v188
    %v200 = vpack.c.b16 %v191, %v190
    %v201 = vpack.c.b16 %v193, %v192
    %210 = vmatpush.bf16.msra.mxu0 %v201
    %211 = vmatpush.bf16.msra.mxu0 %v200
    %212 = vmatpush.bf16.msra.mxu0 %v199
    %213 = vmatpush.bf16.msra.mxu0 %v198
    %214 = vmatpush.bf16.msra.mxu0 %v197
    %215 = vmatpush.bf16.msra.mxu0 %v196
    %216 = vmatpush.bf16.msra.mxu0 %v195
    %217 = vmatpush.bf16.msra.mxu0 %v194
    %218 = vmatmul.bf16.gmra.mxu0 %v141
    %v219 = vpop.f32.mrf.mxu0
    %v220 = vadd.f32 %v160, %v219
    %v221 = vpop.f32.mrf.mxu0
    %222 = vdwg.mxu0
    %v223 = vmax.f32 %v220, 0.0
    %v224 = vpack.c.bf16 %v223, %v223
    %v225 = vld [vmem:[#allocation8] sm:$0xf]
    %v226 = vld [vmem:[#allocation8 + $0x4] sm:$0xf]
    %v227 = vld [vmem:[#allocation8 + $0x8] sm:$0xf]
    %v228 = vld [vmem:[#allocation8 + $0xc] sm:$0xf]
    %v229 = vld [vmem:[#allocation8 + $0x10] sm:$0xf]
    %v230 = vld [vmem:[#allocation8 + $0x14] sm:$0xf]
    %v231 = vld [vmem:[#allocation8 + $0x18] sm:$0xf]
    %v232 = vld [vmem:[#allocation8 + $0x1c] sm:$0xf]
    %v233 = vld [vmem:[#allocation8 + $0x20] sm:$0xf]
    %v234 = vld [vmem:[#allocation8 + $0x24] sm:$0xf]
    %v235 = vld [vmem:[#allocation8 + $0x28] sm:$0xf]
    %v236 = vld [vmem:[#allocation8 + $0x2c] sm:$0xf]
    %v237 = vld [vmem:[#allocation8 + $0x30] sm:$0xf]
    %v238 = vld [vmem:[#allocation8 + $0x34] sm:$0xf]
    %v239 = vld [vmem:[#allocation8 + $0x38] sm:$0xf]
    %v240 = vld [vmem:[#allocation8 + $0x3c] sm:$0xf]
    %v241 = vld [vmem:[%s6] sm:$0x1]
    %v243 = vperm.slane %v241, 0
    %v261 = vunpack.c.l.b16 %v225
    %v262 = vunpack.c.l.b16 %v226
    %v263 = vunpack.c.l.b16 %v227
    %v264 = vunpack.c.l.b16 %v228
    %v265 = vunpack.c.l.b16 %v229
    %v266 = vunpack.c.l.b16 %v230
    %v267 = vunpack.c.l.b16 %v231
    %v268 = vunpack.c.l.b16 %v232
    %v269 = vunpack.c.l.b16 %v233
    %v270 = vunpack.c.l.b16 %v234
    %v271 = vunpack.c.l.b16 %v235
    %v272 = vunpack.c.l.b16 %v236
    %v273 = vunpack.c.l.b16 %v237
    %v274 = vunpack.c.l.b16 %v238
    %v275 = vunpack.c.l.b16 %v239
    %v276 = vunpack.c.l.b16 %v240
    %v277 = vpack.c.b16 %v262, %v261
    %v278 = vpack.c.b16 %v264, %v263
    %v279 = vpack.c.b16 %v266, %v265
    %v280 = vpack.c.b16 %v268, %v267
    %v281 = vpack.c.b16 %v270, %v269
    %v282 = vpack.c.b16 %v272, %v271
    %v283 = vpack.c.b16 %v274, %v273
    %v284 = vpack.c.b16 %v276, %v275
    %293 = vmatpush.bf16.msra.mxu0 %v284
    %294 = vmatpush.bf16.msra.mxu0 %v283
    %295 = vmatpush.bf16.msra.mxu0 %v282
    %296 = vmatpush.bf16.msra.mxu0 %v281
    %297 = vmatpush.bf16.msra.mxu0 %v280
    %298 = vmatpush.bf16.msra.mxu0 %v279
    %299 = vmatpush.bf16.msra.mxu0 %v278
    %300 = vmatpush.bf16.msra.mxu0 %v277
    %301 = vmatmul.bf16.gmra.mxu0 %v224
    %v302 = vpop.f32.mrf.mxu0
    %v303 = vadd.f32 %v243, %v302
    %v304 = vpop.f32.mrf.mxu0
    %305 = vdwg.mxu0
    %vm306 = vcmask 1041408
    %v307 = vsel %vm306, %v303, -inf
    %308 = vmax.xlane.f32.xlu0 %v307
    %v309 = vpop.xlane.xlu0 %308
    %v310 = vsub.f32 %v303, %v309
    %v311 = vmul.f32 %v310, 1.442695
    %v312 = vpow.pop %v311
    %v313 = vld [vmem:[#allocation10] sm:$0xf]
    %v314 = vld [vmem:[#allocation10 + $0x4] sm:$0xf]
    %v315 = vld [vmem:[#allocation10 + $0x8] sm:$0xf]
    %v316 = vld [vmem:[#allocation10 + $0xc] sm:$0xf]
    %v317 = vld [vmem:[#allocation10 + $0x10] sm:$0xf]
    %v318 = vld [vmem:[#allocation10 + $0x14] sm:$0xf]
    %v319 = vld [vmem:[#allocation10 + $0x18] sm:$0xf]
    %v320 = vld [vmem:[#allocation10 + $0x1c] sm:$0xf]
    %v321 = vld [vmem:[#allocation10 + $0x20] sm:$0xf]
    %v322 = vld [vmem:[#allocation10 + $0x24] sm:$0xf]
    %v323 = vld [vmem:[#allocation10 + $0x28] sm:$0xf]
    %v324 = vld [vmem:[#allocation10 + $0x2c] sm:$0xf]
    %v325 = vld [vmem:[#allocation10 + $0x30] sm:$0xf]
    %v326 = vld [vmem:[#allocation10 + $0x34] sm:$0xf]
    %v327 = vld [vmem:[#allocation10 + $0x38] sm:$0xf]
    %v328 = vld [vmem:[#allocation10 + $0x3c] sm:$0xf]
    %v329 = vpack.c.bf16 %v312, %v312
    %v330 = vunpack.c.l.bf16 %v329
    %v331 = vsub.f32 %v312, %v330
    %v332 = vpack.c.bf16 %v331, %v331
    %v349 = vunpack.c.l.b16 %v313
    %v350 = vunpack.c.l.b16 %v314
    %v351 = vunpack.c.l.b16 %v315
    %v352 = vunpack.c.l.b16 %v316
    %v353 = vunpack.c.l.b16 %v317
    %v354 = vunpack.c.l.b16 %v318
    %v355 = vunpack.c.l.b16 %v319
    %v356 = vunpack.c.l.b16 %v320
    %v357 = vunpack.c.l.b16 %v321
    %v358 = vunpack.c.l.b16 %v322
    %v359 = vunpack.c.l.b16 %v323
    %v360 = vunpack.c.l.b16 %v324
    %v361 = vunpack.c.l.b16 %v325
    %v362 = vunpack.c.l.b16 %v326
    %v363 = vunpack.c.l.b16 %v327
    %v364 = vunpack.c.l.b16 %v328
    %v365 = vpack.c.b16 %v350, %v349
    %v366 = vpack.c.b16 %v352, %v351
    %v367 = vpack.c.b16 %v354, %v353
    %v368 = vpack.c.b16 %v356, %v355
    %v369 = vpack.c.b16 %v358, %v357
    %v370 = vpack.c.b16 %v360, %v359
    %v371 = vpack.c.b16 %v362, %v361
    %v372 = vpack.c.b16 %v364, %v363
    %381 = vmatpush.bf16.msra.mxu0 %v372
    %382 = vmatpush.bf16.msra.mxu0 %v371
    %383 = vmatpush.bf16.msra.mxu0 %v370
    %384 = vmatpush.bf16.msra.mxu0 %v369
    %385 = vmatpush.bf16.msra.mxu0 %v368
    %386 = vmatpush.bf16.msra.mxu0 %v367
    %387 = vmatpush.bf16.msra.mxu0 %v366
    %388 = vmatpush.bf16.msra.mxu0 %v365
    %389 = vmatmul.bf16.gmra.mxu0 %v332
    %v390 = vpop.f32.mrf.mxu0
    %v391 = vadd.f32 0.0, %v390
    %v392 = vpop.f32.mrf.mxu0
    %393 = vdwg.mxu0
    %394 = vmatpush.bf16.msra.mxu0 %v372
    %395 = vmatpush.bf16.msra.mxu0 %v371
    %396 = vmatpush.bf16.msra.mxu0 %v370
    %397 = vmatpush.bf16.msra.mxu0 %v369
    %398 = vmatpush.bf16.msra.mxu0 %v368
    %399 = vmatpush.bf16.msra.mxu0 %v367
    %400 = vmatpush.bf16.msra.mxu0 %v366
    %401 = vmatpush.bf16.msra.mxu0 %v365
    %402 = vmatmul.bf16.gmra.mxu0 %v329
    %v403 = vpop.f32.mrf.mxu0
    %v404 = vadd.f32 %v391, %v403
    %v405 = vpop.f32.mrf.mxu0
    %406 = vdwg.mxu0
    %v407 = vmax.f32 %v404, 1e-30
    %v408 = vrcp.pop %v407
    %v409 = vmul.f32 %v407, %v408
    %v410 = vsub.f32 1.0, %v409
    %v411 = vmul.f32 %v408, %v410
    %v412 = vadd.f32 %v408, %v411
    %vm413 = vweird.f32 %v407
    %vm414 = vweird.f32 %v408
    %vm415 = vmor %vm413, %vm414
    %v416 = vsel %vm415, %v408, %v412
    %v417 = vand.u32 2147483647, %v407
    %vm418 = vcmp.eq.f32.partialorder %v417, 8.507059e+37
    %v419 = vand.u32 %v407, 2147483648
    %v420 = vor.u32 1.1754944e-38, %v419
    %v421 = vsel %vm418, %v420, %v416
    %v422 = vmul.f32 %v312, %v421
    %423 = vst [vmem:[#allocation11] sm:$0x3] %v422
    %v424 = vlog2.pop %v407
    %v425 = vmul.f32 %v424, 0.6931472
    %v426 = vsub.f32 %v310, %v425
    %427 = vst [vmem:[#allocation12] sm:$0x3] %v426
    // Predicated region
    $region54: #{tpu_custom_call.1} parent=1 // pred_check
      _
    $region55: #{tpu_custom_call.1} parent=1 // pred_check_branch
      %429 = sbr.rel (0) target = $region57
    $region56: #{tpu_custom_call.1} parent=1 // pred_region
      %431 = vsyncadd [#allocation4], 0
      %s433 = sshll.u32 [#allocation11], 4
      %s434 = int_to_ptr.vmem [resolvable:$true] %s433
      %s435 = sshll.u32 %s8, 4
      %s436 = int_to_ptr.hbm [resolvable:$true] %s435
      %438 = dma.vmem_to_hbm [thread:$0]  %s434, 32, %s436, [#allocation4]
    $region57: #{tpu_custom_call.1} parent=1 // pred_fallthru
      _
    // Predicated region
    $region58: #{tpu_custom_call.1} parent=1 // pred_check
      _
    $region59: #{tpu_custom_call.1} parent=1 // pred_check_branch
      %440 = sbr.rel (0) target = $region61
    $region60: #{tpu_custom_call.1} parent=1 // pred_region
      %442 = vsyncadd [#allocation13], 0
      %s444 = sshll.u32 [#allocation12], 4
      %s445 = int_to_ptr.vmem [resolvable:$true] %s444
      %s446 = sshll.u32 %s9, 4
      %s447 = int_to_ptr.hbm [resolvable:$true] %s446
      %449 = dma.vmem_to_hbm [thread:$0]  %s445, 32, %s447, [#allocation13]
    $region61: #{tpu_custom_call.1} parent=1 // pred_fallthru
      _
    // Predicated region
    $region62: #{tpu_custom_call.1} parent=1 // pred_check
      _
    $region63: #{tpu_custom_call.1} parent=1 // pred_check_branch
      %451 = sbr.rel (0) target = $region65
    $region64: #{tpu_custom_call.1} parent=1 // pred_region
      %453 = dma.done [#allocation4], 32
    $region65: #{tpu_custom_call.1} parent=1 // pred_fallthru
      _
    // Predicated region
    $region66: #{tpu_custom_call.1} parent=1 // pred_check
      _
    $region67: #{tpu_custom_call.1} parent=1 // pred_check_branch
      %455 = sbr.rel (0) target = $region69
    $region68: #{tpu_custom_call.1} parent=1 // pred_region
      %457 = dma.done [#allocation13], 32
    $region69: #{tpu_custom_call.1} parent=1 // pred_fallthru
      _
    %458 = vsyncpa [#allocation3], 1
    %459 = vsyncpa [#allocation6], 1
    %460 = vsyncpa [#allocation9], 1
    %461 = vsyncpa [#allocation4], 1
    %462 = vsyncpa [#allocation13], 1

</llo_original>
